<compile_context>
chip_gen: v5e
topology: v5e:2x2
jax: 0.10.0
libtpu: 0.0.40
codegen_flags: <defaults>
</compile_context>

<pallas_src>
import jax
import jax.numpy as jnp
from jax.experimental import pallas as pl
from jax.experimental.pallas import tpu as pltpu


def _round_up(x, m):
    return (x + m - 1) // m * m


def _pad2(x, rows, cols):
    return jnp.pad(x, ((0, rows - x.shape[0]), (0, cols - x.shape[1])))


def _vmem_capacity_bytes():
    try:
        return int(pltpu.get_tpu_info().vmem_capacity_bytes)
    except Exception:
        return 128 * 1024 * 1024


def _default_exp_dtype(compute_dtype):
    # bf16 exp only where the EUP is bf16-native (v6e / v7x); f32 elsewhere.
    if jnp.dtype(compute_dtype) == jnp.dtype(jnp.float32):
        return jnp.float32
    try:
        kind = jax.devices()[0].device_kind.lower()
    except Exception:
        return jnp.float32
    return jnp.bfloat16 if ("v6" in kind or "v7" in kind) else jnp.float32


def feature_augmentation_network(features, memory_features, wq, bq, wk, bk,
                                 merge_coeff=None, *, rng_key=None,
                                 compute_dtype=jnp.bfloat16, tile_n=512,
                                 exp_dtype=None):
    """JAX/Pallas equivalent of FeatureAugmentationNetwork2.forward.

    features:        (N, H) float32
    memory_features: (M, H) float32
    wq, wk:          (H, H) float32  pre-transposed (kernel does x @ W + b)
    bq, bk:          (H,)   float32
    merge_coeff:     None (-> beta(0.5,0.5) draw) or (N, 1) float32
    compute_dtype:   MXU feed dtype (default bf16; accumulation/elementwise f32)
    """
    features = jnp.asarray(features, jnp.float32)
    memory_features = jnp.asarray(memory_features, jnp.float32)
    wq = jnp.asarray(wq, jnp.float32)
    bq = jnp.asarray(bq, jnp.float32)
    wk = jnp.asarray(wk, jnp.float32)
    bk = jnp.asarray(bk, jnp.float32)

    n, h = features.shape
    m, _ = memory_features.shape

    if merge_coeff is None:
        # TODO(synk): torch draws np.random.beta on host; here it is a
        # deterministic jax.random.beta draw in the wrapper (no in-kernel beta).
        if rng_key is None:
            rng_key = jax.random.PRNGKey(0)
        merge_coeff = jax.random.beta(rng_key, 0.5, 0.5, shape=(n, 1),
                                      dtype=jnp.float32)
    else:
        merge_coeff = jnp.asarray(merge_coeff, jnp.float32).reshape(n, 1)

    compute_dtype = jnp.dtype(compute_dtype)
    if exp_dtype is None:
        exp_dtype = _default_exp_dtype(compute_dtype)
    itemsize = compute_dtype.itemsize

    # ---- key projection hoisted out of the per-tile loop, pre-transposed ----
    k_proj = memory_features @ wk + bk                              # (M, H) f32

    # ---- lane/sublane-aligned padding ---------------------------------------
    sub = 8                          # tiled arrays (feat/merge/out) stay f32
    hp = _round_up(h, 128)           # lane-dense hidden dim
    mp = _round_up(m, 128)           # lane-dense memory dim (minor dim of k^T)

    cap = _vmem_capacity_bytes()
    cap_limit = int(cap * 0.85)      # ~109 MiB on v5e/v6e, ~54 MiB on v7x

    def vmem_request(tn_):
        # residents (conservatively counted double-buffered), pipelined tiles,
        # and in-kernel intermediates (q, logits, p, aug).
        residents = (hp * hp + 2 * hp * mp) * itemsize + hp * 4 + mp * 4
        pipelined = 2 * (tn_ * hp * 4 + tn_ * 4) + 2 * tn_ * hp * 4
        interm = tn_ * (2 * hp + 2 * mp) * 4 + tn_ * mp * itemsize
        return 2 * residents + pipelined + interm

    tn = _round_up(min(int(tile_n), _round_up(n, sub)), sub)
    if n > sub and (n + tn - 1) // tn < 2:
        # at least 2 N-tiles so both v7x TensorCores get work under "parallel"
        tn = _round_up((n + 1) // 2, sub)
    while tn > sub and vmem_request(tn) > cap_limit:
        tn = max(sub, _round_up(tn // 2, sub))
    np_ = _round_up(n, tn)

    # TODO(synk): for very large M*H (residents exceed cap_limit) add a second
    # "arbitrary" grid axis over M with flash-style online softmax instead of
    # keeping k^T / memory fully resident.
    # TODO(synk): for very large H (hp*hp*itemsize dominating VMEM), hoist the
    # q projection into the wrapper like k and drop Wq/bq from the kernel.

    feat_p = _pad2(features, np_, hp)                        # f32 passthrough
    wq_p = _pad2(wq, hp, hp).astype(compute_dtype)
    bq_p = jnp.pad(bq, (0, hp - h)).reshape(1, hp).astype(jnp.float32)
    kt_p = _pad2(k_proj.T, hp, mp).astype(compute_dtype)     # (Hp, Mp)
    mem_p = _pad2(memory_features, mp, hp).astype(compute_dtype)
    mask_p = jnp.where(jnp.arange(mp) < m, 0.0, -1e30).reshape(1, mp) \
                .astype(jnp.float32)                         # additive pad mask
    merge_p = _pad2(merge_coeff, np_, 1)

    def kernel(feat_ref, wq_ref, bq_ref, kt_ref, mem_ref, mask_ref, merge_ref,
               out_ref):
        feat = feat_ref[...]                                 # (tn, hp) f32
        # q projection on the MXU: bf16/f32 feeds, f32 accumulation + f32 bias.
        q = jnp.dot(feat.astype(compute_dtype), wq_ref[...],
                    preferred_element_type=jnp.float32) + bq_ref[...]
        # logits: canonical (tn,hp) @ (hp,mp) feed against pre-transposed k.
        logits = jnp.dot(q.astype(compute_dtype), kt_ref[...],
                         preferred_element_type=jnp.float32)  # (tn, mp)
        logits = logits + mask_ref[...]                       # mask padded cols
        mx = jnp.max(logits, axis=-1, keepdims=True)
        p = jnp.exp((logits - mx).astype(exp_dtype))          # unnormalised
        denom = jnp.sum(p.astype(jnp.float32), axis=-1, keepdims=True)
        # deferred softmax normalisation: scale the (tn, hp) matmul result.
        aug = jnp.dot(p.astype(compute_dtype), mem_ref[...],
                      preferred_element_type=jnp.float32)     # (tn, hp)
        aug = aug * pl.reciprocal(denom, approx=False)
        merge = merge_ref[...]                                # (tn, 1) f32
        # fused blend: merge*feat + (1-merge)*aug == aug + merge*(feat - aug)
        out_ref[...] = (aug + merge * (feat - aug)).astype(out_ref.dtype)

    row = lambda i: (i, 0)      # tiled over N
    const = lambda i: (0, 0)    # VMEM-resident across all tiles

    vmem_limit = int(min(cap_limit,
                         max(32 * 1024 * 1024, int(1.25 * vmem_request(tn)))))

    flops = 2 * np_ * hp * hp + 4 * np_ * mp * hp
    bytes_accessed = int(feat_p.size * 4 + wq_p.size * itemsize
                         + kt_p.size * itemsize + mem_p.size * itemsize
                         + bq_p.size * 4 + mask_p.size * 4 + merge_p.size * 4
                         + np_ * hp * 4)
    cost = pl.CostEstimate(flops=flops, transcendentals=np_ * mp + np_,
                           bytes_accessed=bytes_accessed)

    def _run(single_buffer_residents):
        res_kw = ({"pipeline_mode": pl.Buffered(1)}
                  if single_buffer_residents else {})
        in_specs = [
            pl.BlockSpec((tn, hp), row),                 # features    (tiled)
            pl.BlockSpec((hp, hp), const, **res_kw),     # Wq          (resident)
            pl.BlockSpec((1, hp), const, **res_kw),      # bq          (resident)
            pl.BlockSpec((hp, mp), const, **res_kw),     # k^T         (resident)
            pl.BlockSpec((mp, hp), const, **res_kw),     # memory      (resident)
            pl.BlockSpec((1, mp), const, **res_kw),      # pad mask    (resident)
            pl.BlockSpec((tn, 1), row),                  # merge coeff (tiled)
        ]
        call = pl.pallas_call(
            kernel,
            out_shape=jax.ShapeDtypeStruct((np_, hp), jnp.float32),
            grid_spec=pltpu.PrefetchScalarGridSpec(
                num_scalar_prefetch=0,
                grid=(np_ // tn,),
                in_specs=in_specs,
                out_specs=pl.BlockSpec((tn, hp), row)),
            compiler_params=pltpu.CompilerParams(
                dimension_semantics=("parallel",),
                vmem_limit_bytes=vmem_limit),
            cost_estimate=cost,
        )
        return call(feat_p, wq_p, bq_p, kt_p, mem_p, mask_p, merge_p)

    try:
        out_p = _run(True)
    except Exception:
        # this jax version rejected pl.Buffered(1) on constant operands;
        # fall back to default double-buffered residents (correct, more VMEM).
        out_p = _run(False)

    # strip padding rows/lanes
    return out_p[:n, :h]


def _reference(features, memory_features, wq, bq, wk, bk, merge_coeff):
    q = features @ wq + bq
    k = memory_features @ wk + bk
    attn = jax.nn.softmax((q @ k.T) / 1.0, axis=-1)
    aug = attn @ memory_features
    return merge_coeff * features + (1.0 - merge_coeff) * aug


if __name__ == "__main__":
    key = jax.random.PRNGKey(0)
    kf, km, kwq, kbq, kwk, kbk, kmc = jax.random.split(key, 7)

    # Small shapes consistent with the module; deliberately NOT multiples of
    # the TPU tile quanta so the padding / masking paths are exercised.
    N, M, H = 10, 13, 32

    features = jax.random.normal(kf, (N, H), dtype=jnp.float32)
    memory_features = jax.random.normal(km, (M, H), dtype=jnp.float32)

    # nn.Linear-style init (uniform +-1/sqrt(H)); weights pre-transposed so the
    # kernel computes x @ W + b (== torch's x @ W.T + b).
    lim = 1.0 / (H ** 0.5)
    wq = jax.random.uniform(kwq, (H, H), minval=-lim, maxval=lim, dtype=jnp.float32)
    bq = jax.random.uniform(kbq, (H,), minval=-lim, maxval=lim, dtype=jnp.float32)
    wk = jax.random.uniform(kwk, (H, H), minval=-lim, maxval=lim, dtype=jnp.float32)
    bk = jax.random.uniform(kbk, (H,), minval=-lim, maxval=lim, dtype=jnp.float32)

    # deterministic beta(0.5, 0.5) merge coefficient (torch draws np.random.beta
    # when self.merge_coeff is None).
    merge_coeff = jax.random.beta(kmc, 0.5, 0.5, shape=(N, 1), dtype=jnp.float32)

    ref = _reference(features, memory_features, wq, bq, wk, bk, merge_coeff)

    # f32 MXU-feed path (reference-accuracy check).
    out_f32 = feature_augmentation_network(
        features, memory_features, wq, bq, wk, bk, merge_coeff=merge_coeff,
        compute_dtype=jnp.float32)
    out_f32 = jax.block_until_ready(out_f32)
    assert out_f32.shape == (N, H)
    assert jnp.allclose(out_f32, ref, atol=2e-3, rtol=2e-3), \
        float(jnp.max(jnp.abs(out_f32 - ref)))

    # bf16 MXU-feed default path (f32 accumulation, f32 feature passthrough).
    out_bf16 = feature_augmentation_network(
        features, memory_features, wq, bq, wk, bk, merge_coeff=merge_coeff)
    out_bf16 = jax.block_until_ready(out_bf16)
    assert out_bf16.shape == (N, H)
    assert jnp.allclose(out_bf16, ref, atol=1e-1, rtol=1e-1), \
        float(jnp.max(jnp.abs(out_bf16 - ref)))

    print("KERNEL_OK")
</pallas_src>

<mosaic_0001>
module attributes {stable_mosaic.version = 11 : i64} {
  func.func @kernel(%arg0: i32, %arg1: memref<8x128xf32, #tpu.memory_space<vmem>>, %arg2: memref<128x128xf32, #tpu.memory_space<vmem>>, %arg3: memref<1x128xf32, #tpu.memory_space<vmem>>, %arg4: memref<128x128xf32, #tpu.memory_space<vmem>>, %arg5: memref<128x128xf32, #tpu.memory_space<vmem>>, %arg6: memref<1x128xf32, #tpu.memory_space<vmem>>, %arg7: memref<8x1xf32, #tpu.memory_space<vmem>>, %arg8: memref<8x128xf32, #tpu.memory_space<vmem>>) attributes {dimension_semantics = [#tpu.dimension_semantics<parallel>], iteration_bounds = array<i64: 2>, scalar_prefetch = 0 : i64, scratch_operands = 0 : i64, tpu.core_type = #tpu.core_type<tc>, window_params = [{transform_indices = @transform_0, window_bounds = array<i64: 8, 128>}, {pipeline_mode = #tpu.pipeline_mode<synchronous>, transform_indices = @transform_1, window_bounds = array<i64: 128, 128>}, {pipeline_mode = #tpu.pipeline_mode<synchronous>, transform_indices = @transform_2, window_bounds = array<i64: 1, 128>}, {pipeline_mode = #tpu.pipeline_mode<synchronous>, transform_indices = @transform_3, window_bounds = array<i64: 128, 128>}, {pipeline_mode = #tpu.pipeline_mode<synchronous>, transform_indices = @transform_4, window_bounds = array<i64: 128, 128>}, {pipeline_mode = #tpu.pipeline_mode<synchronous>, transform_indices = @transform_5, window_bounds = array<i64: 1, 128>}, {transform_indices = @transform_6, window_bounds = array<i64: 8, 1>}, {transform_indices = @transform_7, window_bounds = array<i64: 8, 128>}]} {
    %c0 = arith.constant 0 : index
    %c0_0 = arith.constant 0 : index
    %0 = vector.load %arg1[%c0, %c0_0] : memref<8x128xf32, #tpu.memory_space<vmem>>, vector<8x128xf32>
    %c0_1 = arith.constant 0 : index
    %c0_2 = arith.constant 0 : index
    %1 = vector.load %arg2[%c0_1, %c0_2] : memref<128x128xf32, #tpu.memory_space<vmem>>, vector<128x128xf32>
    %cst = arith.constant dense<0.000000e+00> : vector<8x128xf32>
    %2 = tpu.matmul %0, %1, %cst {dimension_numbers = #tpu.dot_dimension_numbers<[1], [0], [0], [1], [0, 0, 1, 1], [], []>} : vector<8x128xf32>, vector<128x128xf32>, vector<8x128xf32> -> vector<8x128xf32>
    %c0_3 = arith.constant 0 : index
    %c0_4 = arith.constant 0 : index
    %3 = vector.load %arg3[%c0_3, %c0_4] : memref<1x128xf32, #tpu.memory_space<vmem>>, vector<1x128xf32>
    %4 = vector.broadcast %3 : vector<1x128xf32> to vector<8x128xf32>
    %5 = arith.addf %2, %4 : vector<8x128xf32>
    %c0_5 = arith.constant 0 : index
    %c0_6 = arith.constant 0 : index
    %6 = vector.load %arg4[%c0_5, %c0_6] : memref<128x128xf32, #tpu.memory_space<vmem>>, vector<128x128xf32>
    %cst_7 = arith.constant dense<0.000000e+00> : vector<8x128xf32>
    %7 = tpu.matmul %5, %6, %cst_7 {dimension_numbers = #tpu.dot_dimension_numbers<[1], [0], [0], [1], [0, 0, 1, 1], [], []>} : vector<8x128xf32>, vector<128x128xf32>, vector<8x128xf32> -> vector<8x128xf32>
    %c0_8 = arith.constant 0 : index
    %c0_9 = arith.constant 0 : index
    %8 = vector.load %arg6[%c0_8, %c0_9] : memref<1x128xf32, #tpu.memory_space<vmem>>, vector<1x128xf32>
    %9 = vector.broadcast %8 : vector<1x128xf32> to vector<8x128xf32>
    %10 = arith.addf %7, %9 : vector<8x128xf32>
    %cst_10 = arith.constant dense<0xFF800000> : vector<8xf32>
    %11 = vector.multi_reduction <maximumf>, %10, %cst_10 [1] : vector<8x128xf32> to vector<8xf32>
    %12 = vector.shape_cast %11 : vector<8xf32> to vector<8x1xf32>
    %13 = vector.broadcast %12 : vector<8x1xf32> to vector<8x128xf32>
    %14 = arith.subf %10, %13 : vector<8x128xf32>
    %15 = math.exp %14 : vector<8x128xf32>
    %cst_11 = arith.constant dense<0.000000e+00> : vector<8xf32>
    %16 = vector.multi_reduction <add>, %15, %cst_11 [1] : vector<8x128xf32> to vector<8xf32>
    %17 = vector.shape_cast %16 : vector<8xf32> to vector<8x1xf32>
    %c0_12 = arith.constant 0 : index
    %c0_13 = arith.constant 0 : index
    %18 = vector.load %arg5[%c0_12, %c0_13] : memref<128x128xf32, #tpu.memory_space<vmem>>, vector<128x128xf32>
    %cst_14 = arith.constant dense<0.000000e+00> : vector<8x128xf32>
    %19 = tpu.matmul %15, %18, %cst_14 {dimension_numbers = #tpu.dot_dimension_numbers<[1], [0], [0], [1], [0, 0, 1, 1], [], []>} : vector<8x128xf32>, vector<128x128xf32>, vector<8x128xf32> -> vector<8x128xf32>
    %20 = tpu.reciprocal %17 : vector<8x1xf32> -> vector<8x1xf32>
    %21 = vector.broadcast %20 : vector<8x1xf32> to vector<8x128xf32>
    %22 = arith.mulf %19, %21 : vector<8x128xf32>
    %c0_15 = arith.constant 0 : index
    %c0_16 = arith.constant 0 : index
    %23 = vector.load %arg7[%c0_15, %c0_16] : memref<8x1xf32, #tpu.memory_space<vmem>>, vector<8x1xf32>
    %24 = arith.subf %0, %22 : vector<8x128xf32>
    %25 = vector.broadcast %23 : vector<8x1xf32> to vector<8x128xf32>
    %26 = arith.mulf %25, %24 : vector<8x128xf32>
    %27 = arith.addf %22, %26 : vector<8x128xf32>
    %c0_17 = arith.constant 0 : index
    %c0_18 = arith.constant 0 : index
    %28 = vector.load %arg8[%c0_17, %c0_18] : memref<8x128xf32, #tpu.memory_space<vmem>>, vector<8x128xf32>
    tpu.vector_store %arg8[%c0_17, %c0_18], %27 {strides = array<i32>} : memref<8x128xf32, #tpu.memory_space<vmem>>, vector<8x128xf32>,
    return
  }
  func.func @transform_0(%arg0: i32) -> (i32, i32) {
    %c0_i32 = arith.constant 0 : i32
    %c0_i32_0 = arith.constant 0 : i32
    return %arg0, %c0_i32 : i32, i32
  }
  func.func @transform_1(%arg0: i32) -> (i32, i32) {
    %c0_i32 = arith.constant 0 : i32
    %c0_i32_0 = arith.constant 0 : i32
    %c0_i32_1 = arith.constant 0 : i32
    return %c0_i32, %c0_i32_0 : i32, i32
  }
  func.func @transform_2(%arg0: i32) -> (i32, i32) {
    %c0_i32 = arith.constant 0 : i32
    %c0_i32_0 = arith.constant 0 : i32
    %c0_i32_1 = arith.constant 0 : i32
    return %c0_i32, %c0_i32_0 : i32, i32
  }
  func.func @transform_3(%arg0: i32) -> (i32, i32) {
    %c0_i32 = arith.constant 0 : i32
    %c0_i32_0 = arith.constant 0 : i32
    %c0_i32_1 = arith.constant 0 : i32
    return %c0_i32, %c0_i32_0 : i32, i32
  }
  func.func @transform_4(%arg0: i32) -> (i32, i32) {
    %c0_i32 = arith.constant 0 : i32
    %c0_i32_0 = arith.constant 0 : i32
    %c0_i32_1 = arith.constant 0 : i32
    return %c0_i32, %c0_i32_0 : i32, i32
  }
  func.func @transform_5(%arg0: i32) -> (i32, i32) {
    %c0_i32 = arith.constant 0 : i32
    %c0_i32_0 = arith.constant 0 : i32
    %c0_i32_1 = arith.constant 0 : i32
    return %c0_i32, %c0_i32_0 : i32, i32
  }
  func.func @transform_6(%arg0: i32) -> (i32, i32) {
    %c0_i32 = arith.constant 0 : i32
    %c0_i32_0 = arith.constant 0 : i32
    return %arg0, %c0_i32 : i32, i32
  }
  func.func @transform_7(%arg0: i32) -> (i32, i32) {
    %c0_i32 = arith.constant 0 : i32
    %c0_i32_0 = arith.constant 0 : i32
    return %arg0, %c0_i32 : i32, i32
  }
}

module attributes {stable_mosaic.version = 11 : i64} {
  func.func @kernel(%arg0: i32, %arg1: memref<8x128xf32, #tpu.memory_space<vmem>>, %arg2: memref<128x128xf32, #tpu.memory_space<vmem>>, %arg3: memref<1x128xf32, #tpu.memory_space<vmem>>, %arg4: memref<128x128xf32, #tpu.memory_space<vmem>>, %arg5: memref<128x128xf32, #tpu.memory_space<vmem>>, %arg6: memref<1x128xf32, #tpu.memory_space<vmem>>, %arg7: memref<8x1xf32, #tpu.memory_space<vmem>>, %arg8: memref<8x128xf32, #tpu.memory_space<vmem>>) attributes {dimension_semantics = [#tpu.dimension_semantics<parallel>], iteration_bounds = array<i64: 2>, scalar_prefetch = 0 : i64, scratch_operands = 0 : i64, tpu.core_type = #tpu.core_type<tc>, window_params = [{transform_indices = @transform_0, window_bounds = array<i64: 8, 128>}, {pipeline_mode = #tpu.pipeline_mode<synchronous>, transform_indices = @transform_1, window_bounds = array<i64: 128, 128>}, {pipeline_mode = #tpu.pipeline_mode<synchronous>, transform_indices = @transform_2, window_bounds = array<i64: 1, 128>}, {pipeline_mode = #tpu.pipeline_mode<synchronous>, transform_indices = @transform_3, window_bounds = array<i64: 128, 128>}, {pipeline_mode = #tpu.pipeline_mode<synchronous>, transform_indices = @transform_4, window_bounds = array<i64: 128, 128>}, {pipeline_mode = #tpu.pipeline_mode<synchronous>, transform_indices = @transform_5, window_bounds = array<i64: 1, 128>}, {transform_indices = @transform_6, window_bounds = array<i64: 8, 1>}, {transform_indices = @transform_7, window_bounds = array<i64: 8, 128>}]} {
    %c0 = arith.constant 0 : index
    %c0_0 = arith.constant 0 : index
    %0 = vector.load %arg1[%c0, %c0_0] : memref<8x128xf32, #tpu.memory_space<vmem>>, vector<8x128xf32>
    %c0_1 = arith.constant 0 : index
    %c0_2 = arith.constant 0 : index
    %1 = vector.load %arg2[%c0_1, %c0_2] : memref<128x128xf32, #tpu.memory_space<vmem>>, vector<128x128xf32>
    %cst = arith.constant dense<0.000000e+00> : vector<8x128xf32>
    %2 = tpu.matmul %0, %1, %cst {dimension_numbers = #tpu.dot_dimension_numbers<[1], [0], [0], [1], [0, 0, 1, 1], [], []>} : vector<8x128xf32>, vector<128x128xf32>, vector<8x128xf32> -> vector<8x128xf32>
    %c0_3 = arith.constant 0 : index
    %c0_4 = arith.constant 0 : index
    %3 = vector.load %arg3[%c0_3, %c0_4] : memref<1x128xf32, #tpu.memory_space<vmem>>, vector<1x128xf32>
    %4 = vector.broadcast %3 : vector<1x128xf32> to vector<8x128xf32>
    %5 = arith.addf %2, %4 : vector<8x128xf32>
    %c0_5 = arith.constant 0 : index
    %c0_6 = arith.constant 0 : index
    %6 = vector.load %arg4[%c0_5, %c0_6] : memref<128x128xf32, #tpu.memory_space<vmem>>, vector<128x128xf32>
    %cst_7 = arith.constant dense<0.000000e+00> : vector<8x128xf32>
    %7 = tpu.matmul %5, %6, %cst_7 {dimension_numbers = #tpu.dot_dimension_numbers<[1], [0], [0], [1], [0, 0, 1, 1], [], []>} : vector<8x128xf32>, vector<128x128xf32>, vector<8x128xf32> -> vector<8x128xf32>
    %c0_8 = arith.constant 0 : index
    %c0_9 = arith.constant 0 : index
    %8 = vector.load %arg6[%c0_8, %c0_9] : memref<1x128xf32, #tpu.memory_space<vmem>>, vector<1x128xf32>
    %9 = vector.broadcast %8 : vector<1x128xf32> to vector<8x128xf32>
    %10 = arith.addf %7, %9 : vector<8x128xf32>
    %cst_10 = arith.constant dense<0xFF800000> : vector<8xf32>
    %11 = vector.multi_reduction <maximumf>, %10, %cst_10 [1] : vector<8x128xf32> to vector<8xf32>
    %12 = vector.shape_cast %11 : vector<8xf32> to vector<8x1xf32>
    %13 = vector.broadcast %12 : vector<8x1xf32> to vector<8x128xf32>
    %14 = arith.subf %10, %13 : vector<8x128xf32>
    %15 = math.exp %14 : vector<8x128xf32>
    %cst_11 = arith.constant dense<0.000000e+00> : vector<8xf32>
    %16 = vector.multi_reduction <add>, %15, %cst_11 [1] : vector<8x128xf32> to vector<8xf32>
    %17 = vector.shape_cast %16 : vector<8xf32> to vector<8x1xf32>
    %c0_12 = arith.constant 0 : index
    %c0_13 = arith.constant 0 : index
    %18 = vector.load %arg5[%c0_12, %c0_13] : memref<128x128xf32, #tpu.memory_space<vmem>>, vector<128x128xf32>
    %cst_14 = arith.constant dense<0.000000e+00> : vector<8x128xf32>
    %19 = tpu.matmul %15, %18, %cst_14 {dimension_numbers = #tpu.dot_dimension_numbers<[1], [0], [0], [1], [0, 0, 1, 1], [], []>} : vector<8x128xf32>, vector<128x128xf32>, vector<8x128xf32> -> vector<8x128xf32>
    %20 = tpu.reciprocal %17 : vector<8x1xf32> -> vector<8x1xf32>
    %21 = vector.broadcast %20 : vector<8x1xf32> to vector<8x128xf32>
    %22 = arith.mulf %19, %21 : vector<8x128xf32>
    %c0_15 = arith.constant 0 : index
    %c0_16 = arith.constant 0 : index
    %23 = vector.load %arg7[%c0_15, %c0_16] : memref<8x1xf32, #tpu.memory_space<vmem>>, vector<8x1xf32>
    %24 = arith.subf %0, %22 : vector<8x128xf32>
    %25 = vector.broadcast %23 : vector<8x1xf32> to vector<8x128xf32>
    %26 = arith.mulf %25, %24 : vector<8x128xf32>
    %27 = arith.addf %22, %26 : vector<8x128xf32>
    %c0_17 = arith.constant 0 : index
    %c0_18 = arith.constant 0 : index
    %28 = vector.load %arg8[%c0_17, %c0_18] : memref<8x128xf32, #tpu.memory_space<vmem>>, vector<8x128xf32>
    tpu.vector_store %arg8[%c0_17, %c0_18], %27 {strides = array<i32>} : memref<8x128xf32, #tpu.memory_space<vmem>>, vector<8x128xf32>,
    return
  }
  func.func @transform_0(%arg0: i32) -> (i32, i32) {
    %c0_i32 = arith.constant 0 : i32
    %c0_i32_0 = arith.constant 0 : i32
    return %arg0, %c0_i32 : i32, i32
  }
  func.func @transform_1(%arg0: i32) -> (i32, i32) {
    %c0_i32 = arith.constant 0 : i32
    %c0_i32_0 = arith.constant 0 : i32
    %c0_i32_1 = arith.constant 0 : i32
    return %c0_i32, %c0_i32_0 : i32, i32
  }
  func.func @transform_2(%arg0: i32) -> (i32, i32) {
    %c0_i32 = arith.constant 0 : i32
    %c0_i32_0 = arith.constant 0 : i32
    %c0_i32_1 = arith.constant 0 : i32
    return %c0_i32, %c0_i32_0 : i32, i32
  }
  func.func @transform_3(%arg0: i32) -> (i32, i32) {
    %c0_i32 = arith.constant 0 : i32
    %c0_i32_0 = arith.constant 0 : i32
    %c0_i32_1 = arith.constant 0 : i32
    return %c0_i32, %c0_i32_0 : i32, i32
  }
  func.func @transform_4(%arg0: i32) -> (i32, i32) {
    %c0_i32 = arith.constant 0 : i32
    %c0_i32_0 = arith.constant 0 : i32
    %c0_i32_1 = arith.constant 0 : i32
    return %c0_i32, %c0_i32_0 : i32, i32
  }
  func.func @transform_5(%arg0: i32) -> (i32, i32) {
    %c0_i32 = arith.constant 0 : i32
    %c0_i32_0 = arith.constant 0 : i32
    %c0_i32_1 = arith.constant 0 : i32
    return %c0_i32, %c0_i32_0 : i32, i32
  }
  func.func @transform_6(%arg0: i32) -> (i32, i32) {
    %c0_i32 = arith.constant 0 : i32
    %c0_i32_0 = arith.constant 0 : i32
    return %arg0, %c0_i32 : i32, i32
  }
  func.func @transform_7(%arg0: i32) -> (i32, i32) {
    %c0_i32 = arith.constant 0 : i32
    %c0_i32_0 = arith.constant 0 : i32
    return %arg0, %c0_i32 : i32, i32
  }
}

</mosaic_0001>

<llo_original>
// kernel: tpu_custom_call.1
$region0: #{tpu_custom_call.1}
  #allocation0 [shape = 'u32[]', space=smem, size = 0x4, offset = 0x4, fixed_abs, tag = 'smem constant byte address 0x4 - core index']
  #allocation1 [shape = 'u32[72,128]{1,0:T(1,128)}', space=vmem, size = 0x9000, scoped, tag = 'internal scratch']
  %s0 = inlined_call_operand.vmem [shape: f32[16,128], index: 0, kind: input, shape index: {}]
  %s1 = inlined_call_operand.hbm [shape: f32[128,128], index: 1, kind: input, shape index: {}]
  %s2 = inlined_call_operand.vmem [shape: f32[1,128], index: 2, kind: input, shape index: {}]
  %s3 = inlined_call_operand.hbm [shape: f32[128,128], index: 3, kind: input, shape index: {}]
  %s4 = inlined_call_operand.hbm [shape: f32[128,128], index: 4, kind: input, shape index: {}]
  %s5 = inlined_call_operand.vmem [shape: f32[1,128], index: 5, kind: input, shape index: {}]
  %s6 = inlined_call_operand.vmem [shape: f32[16,1], index: 6, kind: input, shape index: {}]
  %s7 = inlined_call_operand.hbm [shape: f32[16,128], index: 7, kind: output, shape index: {}]
  %s8 = sld [smem:[#allocation0]]
  $region73: #{tpu_custom_call.1} parent=0
    _
  %s10 = ssub.s32 1, %s8
  %s11 = scalar_select 0, %s10, %s8
  $region1: #{tpu_custom_call.1} parent=0
    #allocation2 [shape = 'u8[65536]{0}', space=vmem, size = 0x10000, scoped, tag = 'input window, operand 1, single buffered']
    #allocation3 [shape = 's32[2]{0}', space=sflag, size = 0x8, scoped, tag = 'scoped memory for tpu_custom_call.1']
    #allocation4 [shape = 's32[2]{0}', space=sflag, size = 0x8, scoped, tag = 'scoped memory for tpu_custom_call.1']
    #allocation5 [shape = 'u8[65536]{0}', space=vmem, size = 0x10000, scoped, tag = 'input window, operand 3, single buffered']
    #allocation6 [shape = 's32[1]{0}', space=sflag, size = 0x4, scoped, tag = 'scoped memory for tpu_custom_call.1']
    #allocation7 [shape = 'u8[65536]{0}', space=vmem, size = 0x10000, scoped, tag = 'input window, operand 4, single buffered']
    #allocation8 [shape = 'u8[8192]{0}', space=vmem, size = 0x2000, scoped, tag = 'output window, operand 0']
    %12 = vsyncpa [#allocation3], 0
    %13 = vsyncpa [#allocation6], 0
    %14 = vsyncpa [#allocation4], 0
    %s15 = scalar_lea.sflag [#allocation4], 1
    %16 = vsyncpa %s15, 0
    loop: start=0, step=1, limit=4
    $region2: #{tpu_custom_call.1} parent=1 // loop_pre_header
      _
    $region3: #{tpu_custom_call.1} parent=1 // loop_header
      %s18 = sphi 0, %s22
      %p19 = scmp.ge.s32.totalorder %s18, 4
      %s28 = sphi 0, %s30
      %s31 = sphi 0, %s28
      %s32 = sphi 0, %s31
      %s48 = sphi 0, %s32
      %s52 = sphi 0, %s52
      %s54 = sphi 0, %s52
      %s55 = sphi 0, %s54
      %s69 = sphi 0, %s55
      %s73 = sphi 0, %s73
      %s75 = sphi 0, %s73
      %s76 = sphi 0, %s75
      %s90 = sphi 0, %s76
      %s94 = sphi 0, %s94
      %s96 = sphi 0, %s94
      %s97 = sphi 0, %s96
      %s111 = sphi 0, %s97
      %s115 = sphi 0, %s115
      %s117 = sphi 0, %s115
      %s118 = sphi 0, %s117
      %s132 = sphi 0, %s118
      %s136 = sphi 0, %s136
      %s138 = sphi 0, %s136
      %s139 = sphi 0, %s138
      %s153 = sphi 0, %s139
      %s159 = sphi 0, %s161
      %s162 = sphi 0, %s159
      %s163 = sphi 0, %s162
      %s179 = sphi 0, %s163
      %s185 = sphi 0, %s187
      %s188 = sphi 0, %s185
      %s189 = sphi 0, %s188
      %s205 = sphi 0, %s189
    $region4: #{tpu_custom_call.1} parent=1 // loop_header_branch
      %21 = sbr.rel (%p19) target = $region8
    $region5: #{tpu_custom_call.1} parent=1 // loop_body
      %s23 = ssub.s32 %s18, 1
      %s24 = ssub.s32 %s18, 2
      %s25 = sadd.s32 %s18, 1
      %s26 = ssub.s32 %s18, %s25
      %p27 = scmp.eq.s32.totalorder %s26, 0
      %s29 = sadd.s32 %s28, 1
      %s30 = scalar_select %p27, %s28, %s29
      %p33 = pneg %p27
      %p34 = scmp.eq.s32.totalorder %s18, 1
      %p35 = por %p33, %p34
      %p36 = scmp.ne.s32.totalorder %s28, %s31
      %p37 = scmp.eq.s32.totalorder %s18, 0
      %p38 = por %p36, %p37
      %p39 = scmp.ne.s32.totalorder %s28, %s31
      %p40 = scmp.eq.s32.totalorder %s23, 1
      %p41 = por %p39, %p40
      %p42 = scmp.ne.s32.totalorder %s31, %s32
      %p43 = scmp.eq.s32.totalorder %s23, 0
      %p44 = por %p42, %p43
      %p45 = scmp.ne.s32.totalorder %s31, %s32
      %p46 = scmp.eq.s32.totalorder %s24, 1
      %p47 = por %p45, %p46
      %p49 = scmp.ne.s32.totalorder %s32, %s48
      %p50 = scmp.eq.s32.totalorder %s24, 0
      %p51 = por %p49, %p50
      %s53 = sadd.s32 %s52, 1
      %p56 = scmp.eq.s32.totalorder %s18, 1
      %p57 = scmp.ne.s32.totalorder %s52, %s54
      %p58 = scmp.eq.s32.totalorder %s18, 0
      %p59 = por %p57, %p58
      %p60 = scmp.ne.s32.totalorder %s52, %s54
      %p61 = scmp.eq.s32.totalorder %s23, 1
      %p62 = por %p60, %p61
      %p63 = scmp.ne.s32.totalorder %s54, %s55
      %p64 = scmp.eq.s32.totalorder %s23, 0
      %p65 = por %p63, %p64
      %p66 = scmp.ne.s32.totalorder %s54, %s55
      %p67 = scmp.eq.s32.totalorder %s24, 1
      %p68 = por %p66, %p67
      %p70 = scmp.ne.s32.totalorder %s55, %s69
      %p71 = scmp.eq.s32.totalorder %s24, 0
      %p72 = por %p70, %p71
      %s74 = sadd.s32 %s73, 1
      %p77 = scmp.eq.s32.totalorder %s18, 1
      %p78 = scmp.ne.s32.totalorder %s73, %s75
      %p79 = scmp.eq.s32.totalorder %s18, 0
      %p80 = por %p78, %p79
      %p81 = scmp.ne.s32.totalorder %s73, %s75
      %p82 = scmp.eq.s32.totalorder %s23, 1
      %p83 = por %p81, %p82
      %p84 = scmp.ne.s32.totalorder %s75, %s76
      %p85 = scmp.eq.s32.totalorder %s23, 0
      %p86 = por %p84, %p85
      %p87 = scmp.ne.s32.totalorder %s75, %s76
      %p88 = scmp.eq.s32.totalorder %s24, 1
      %p89 = por %p87, %p88
      %p91 = scmp.ne.s32.totalorder %s76, %s90
      %p92 = scmp.eq.s32.totalorder %s24, 0
      %p93 = por %p91, %p92
      %s95 = sadd.s32 %s94, 1
      %p98 = scmp.eq.s32.totalorder %s18, 1
      %p99 = scmp.ne.s32.totalorder %s94, %s96
      %p100 = scmp.eq.s32.totalorder %s18, 0
      %p101 = por %p99, %p100
      %p102 = scmp.ne.s32.totalorder %s94, %s96
      %p103 = scmp.eq.s32.totalorder %s23, 1
      %p104 = por %p102, %p103
      %p105 = scmp.ne.s32.totalorder %s96, %s97
      %p106 = scmp.eq.s32.totalorder %s23, 0
      %p107 = por %p105, %p106
      %p108 = scmp.ne.s32.totalorder %s96, %s97
      %p109 = scmp.eq.s32.totalorder %s24, 1
      %p110 = por %p108, %p109
      %p112 = scmp.ne.s32.totalorder %s97, %s111
      %p113 = scmp.eq.s32.totalorder %s24, 0
      %p114 = por %p112, %p113
      %s116 = sadd.s32 %s115, 1
      %p119 = scmp.eq.s32.totalorder %s18, 1
      %p120 = scmp.ne.s32.totalorder %s115, %s117
      %p121 = scmp.eq.s32.totalorder %s18, 0
      %p122 = por %p120, %p121
      %p123 = scmp.ne.s32.totalorder %s115, %s117
      %p124 = scmp.eq.s32.totalorder %s23, 1
      %p125 = por %p123, %p124
      %p126 = scmp.ne.s32.totalorder %s117, %s118
      %p127 = scmp.eq.s32.totalorder %s23, 0
      %p128 = por %p126, %p127
      %p129 = scmp.ne.s32.totalorder %s117, %s118
      %p130 = scmp.eq.s32.totalorder %s24, 1
      %p131 = por %p129, %p130
      %p133 = scmp.ne.s32.totalorder %s118, %s132
      %p134 = scmp.eq.s32.totalorder %s24, 0
      %p135 = por %p133, %p134
      %s137 = sadd.s32 %s136, 1
      %p140 = scmp.eq.s32.totalorder %s18, 1
      %p141 = scmp.ne.s32.totalorder %s136, %s138
      %p142 = scmp.eq.s32.totalorder %s18, 0
      %p143 = por %p141, %p142
      %p144 = scmp.ne.s32.totalorder %s136, %s138
      %p145 = scmp.eq.s32.totalorder %s23, 1
      %p146 = por %p144, %p145
      %p147 = scmp.ne.s32.totalorder %s138, %s139
      %p148 = scmp.eq.s32.totalorder %s23, 0
      %p149 = por %p147, %p148
      %p150 = scmp.ne.s32.totalorder %s138, %s139
      %p151 = scmp.eq.s32.totalorder %s24, 1
      %p152 = por %p150, %p151
      %p154 = scmp.ne.s32.totalorder %s139, %s153
      %p155 = scmp.eq.s32.totalorder %s24, 0
      %p156 = por %p154, %p155
      %s157 = ssub.s32 %s18, %s25
      %p158 = scmp.eq.s32.totalorder %s157, 0
      %s160 = sadd.s32 %s159, 1
      %s161 = scalar_select %p158, %s159, %s160
      %p164 = pneg %p158
      %p165 = scmp.eq.s32.totalorder %s18, 1
      %p166 = por %p164, %p165
      %p167 = scmp.ne.s32.totalorder %s159, %s162
      %p168 = scmp.eq.s32.totalorder %s18, 0
      %p169 = por %p167, %p168
      %p170 = scmp.ne.s32.totalorder %s159, %s162
      %p171 = scmp.eq.s32.totalorder %s23, 1
      %p172 = por %p170, %p171
      %p173 = scmp.ne.s32.totalorder %s162, %s163
      %p174 = scmp.eq.s32.totalorder %s23, 0
      %p175 = por %p173, %p174
      %p176 = scmp.ne.s32.totalorder %s162, %s163
      %p177 = scmp.eq.s32.totalorder %s24, 1
      %p178 = por %p176, %p177
      %p180 = scmp.ne.s32.totalorder %s163, %s179
      %p181 = scmp.eq.s32.totalorder %s24, 0
      %p182 = por %p180, %p181
      %s183 = ssub.s32 %s18, %s25
      %p184 = scmp.eq.s32.totalorder %s183, 0
      %s186 = sadd.s32 %s185, 1
      %s187 = scalar_select %p184, %s185, %s186
      %p190 = pneg %p184
      %p191 = scmp.eq.s32.totalorder %s18, 1
      %p192 = por %p190, %p191
      %p193 = scmp.ne.s32.totalorder %s185, %s188
      %p194 = scmp.eq.s32.totalorder %s18, 0
      %p195 = por %p193, %p194
      %p196 = scmp.ne.s32.totalorder %s185, %s188
      %p197 = scmp.eq.s32.totalorder %s23, 1
      %p198 = por %p196, %p197
      %p199 = scmp.ne.s32.totalorder %s188, %s189
      %p200 = scmp.eq.s32.totalorder %s23, 0
      %p201 = por %p199, %p200
      %p202 = scmp.ne.s32.totalorder %s188, %s189
      %p203 = scmp.eq.s32.totalorder %s24, 1
      %p204 = por %p202, %p203
      %p206 = scmp.ne.s32.totalorder %s189, %s205
      %p207 = scmp.eq.s32.totalorder %s24, 0
      %p208 = por %p206, %p207
      %p209 = scmp.le.s32.totalorder 1, %s18
      %p210 = scmp.lt.s32.totalorder %s18, 3
      %p211 = pnand %p209, %p210
      %p212 = pneg %p211
      // Predicated region
      $region9: #{tpu_custom_call.1} parent=5 // pred_check
        _
      $region10: #{tpu_custom_call.1} parent=5 // pred_check_branch
        %214 = sbr.rel (%p211) target = $region12
      $region11: #{tpu_custom_call.1} parent=5 // pred_region
        %s215 = ssub.s32 %s18, 1
        // Predicated region
        $region13: #{tpu_custom_call.1} parent=11 // pred_check
          %p216 = pneg %p65
        $region14: #{tpu_custom_call.1} parent=11 // pred_check_branch
          %218 = sbr.rel (%p216) target = $region16
        $region15: #{tpu_custom_call.1} parent=11 // pred_region
          %220 = vsyncadd [#allocation3], 0
          %s221 = sshll.u32 %s1, 4
          %s222 = int_to_ptr.hbm [resolvable:$true] %s221
          %s223 = sshll.u32 [#allocation2], 4
          %s224 = int_to_ptr.vmem [resolvable:$true] %s223
          %229 = dma.hbm_to_vmem [thread:$0]  %s222, 2048, %s224, [#allocation3], 128, 128, 8
        $region16: #{tpu_custom_call.1} parent=11 // pred_fallthru
          _
        // Predicated region
        $region17: #{tpu_custom_call.1} parent=11 // pred_check
          %p230 = pneg %p86
        $region18: #{tpu_custom_call.1} parent=11 // pred_check_branch
          %232 = sbr.rel (%p230) target = $region20
        $region19: #{tpu_custom_call.1} parent=11 // pred_region
          _
        $region20: #{tpu_custom_call.1} parent=11 // pred_fallthru
          _
        // Predicated region
        $region21: #{tpu_custom_call.1} parent=11 // pred_check
          %p233 = pneg %p107
        $region22: #{tpu_custom_call.1} parent=11 // pred_check_branch
          %235 = sbr.rel (%p233) target = $region24
        $region23: #{tpu_custom_call.1} parent=11 // pred_region
          %237 = vsyncadd [#allocation6], 0
          %s238 = sshll.u32 %s3, 4
          %s239 = int_to_ptr.hbm [resolvable:$true] %s238
          %s240 = sshll.u32 [#allocation5], 4
          %s241 = int_to_ptr.vmem [resolvable:$true] %s240
          %246 = dma.hbm_to_vmem [thread:$0]  %s239, 2048, %s241, [#allocation6], 128, 128, 8
        $region24: #{tpu_custom_call.1} parent=11 // pred_fallthru
          _
        // Predicated region
        $region25: #{tpu_custom_call.1} parent=11 // pred_check
          %p247 = pneg %p128
        $region26: #{tpu_custom_call.1} parent=11 // pred_check_branch
          %249 = sbr.rel (%p247) target = $region28
        $region27: #{tpu_custom_call.1} parent=11 // pred_region
          %251 = vsyncadd [#allocation6], 0
          %s252 = sshll.u32 %s4, 4
          %s253 = int_to_ptr.hbm [resolvable:$true] %s252
          %s254 = sshll.u32 [#allocation7], 4
          %s255 = int_to_ptr.vmem [resolvable:$true] %s254
          %260 = dma.hbm_to_vmem [thread:$0]  %s253, 2048, %s255, [#allocation6], 128, 128, 8
        $region28: #{tpu_custom_call.1} parent=11 // pred_fallthru
          _
        // Predicated region
        $region29: #{tpu_custom_call.1} parent=11 // pred_check
          %p261 = pneg %p149
        $region30: #{tpu_custom_call.1} parent=11 // pred_check_branch
          %263 = sbr.rel (%p261) target = $region32
        $region31: #{tpu_custom_call.1} parent=11 // pred_region
          _
        $region32: #{tpu_custom_call.1} parent=11 // pred_fallthru
          _
      $region12: #{tpu_custom_call.1} parent=5 // pred_fallthru
        _
      %p264 = scmp.lt.s32.totalorder %s18, 2
      // Predicated region
      $region33: #{tpu_custom_call.1} parent=5 // pred_check
        %p265 = pneg %p264
      $region34: #{tpu_custom_call.1} parent=5 // pred_check_branch
        %267 = sbr.rel (%p265) target = $region36
      $region35: #{tpu_custom_call.1} parent=5 // pred_region
        // Predicated region
        $region37: #{tpu_custom_call.1} parent=35 // pred_check
          %p268 = pneg %p38
        $region38: #{tpu_custom_call.1} parent=35 // pred_check_branch
          %270 = sbr.rel (%p268) target = $region40
        $region39: #{tpu_custom_call.1} parent=35 // pred_region
          %p271 = scmp.lt.s32.totalorder %s18, 1
          %s272 = scalar_select %p271, %s18, 1
          %s273 = smul.addr %s272, 8
          %s274 = scalar_lea.vmem %s0, %s273
        $region40: #{tpu_custom_call.1} parent=35 // pred_fallthru
          _
        // Predicated region
        $region41: #{tpu_custom_call.1} parent=35 // pred_check
          %p275 = pneg %p169
        $region42: #{tpu_custom_call.1} parent=35 // pred_check_branch
          %277 = sbr.rel (%p275) target = $region44
        $region43: #{tpu_custom_call.1} parent=35 // pred_region
          %p278 = scmp.lt.s32.totalorder %s18, 1
          %s279 = scalar_select %p278, %s18, 1
          %s280 = smul.addr %s279, 8
          %s281 = scalar_lea.vmem %s6, %s280
        $region44: #{tpu_custom_call.1} parent=35 // pred_fallthru
          _
      $region36: #{tpu_custom_call.1} parent=5 // pred_fallthru
        _
      %p282 = scmp.le.s32.totalorder 1, %s18
      %p283 = scmp.lt.s32.totalorder %s18, 3
      %p284 = pnand %p282, %p283
      %p285 = pneg %p284
      // Predicated region
      $region45: #{tpu_custom_call.1} parent=5 // pred_check
        _
      $region46: #{tpu_custom_call.1} parent=5 // pred_check_branch
        %287 = sbr.rel (%p284) target = $region48
      $region47: #{tpu_custom_call.1} parent=5 // pred_region
        %s288 = ssub.s32 %s18, 1
        // Predicated region
        $region49: #{tpu_custom_call.1} parent=47 // pred_check
          %p289 = pneg %p65
        $region50: #{tpu_custom_call.1} parent=47 // pred_check_branch
          %291 = sbr.rel (%p289) target = $region52
        $region51: #{tpu_custom_call.1} parent=47 // pred_region
          %293 = dma.done [#allocation3], 2048
        $region52: #{tpu_custom_call.1} parent=47 // pred_fallthru
          _
        // Predicated region
        $region53: #{tpu_custom_call.1} parent=47 // pred_check
          %p294 = pneg %p107
        $region54: #{tpu_custom_call.1} parent=47 // pred_check_branch
          %296 = sbr.rel (%p294) target = $region56
        $region55: #{tpu_custom_call.1} parent=47 // pred_region
          %298 = dma.done [#allocation6], 2048
        $region56: #{tpu_custom_call.1} parent=47 // pred_fallthru
          _
        // Predicated region
        $region57: #{tpu_custom_call.1} parent=47 // pred_check
          %p299 = pneg %p128
        $region58: #{tpu_custom_call.1} parent=47 // pred_check_branch
          %301 = sbr.rel (%p299) target = $region60
        $region59: #{tpu_custom_call.1} parent=47 // pred_region
          %303 = dma.done [#allocation6], 2048
        $region60: #{tpu_custom_call.1} parent=47 // pred_fallthru
          _
        %p304 = scmp.lt.s32.totalorder %s23, 1
        %s305 = scalar_select %p304, %s23, 1
        %s306 = smul.addr %s305, 8
        %s307 = scalar_lea.vmem %s0, %s306
        %p308 = pneg %p44
        %p309 = pneg %p41
        %p310 = pneg %p65
        %p311 = pneg %p62
        %p312 = pneg %p86
        %p313 = pneg %p83
        %p314 = pneg %p107
        %p315 = pneg %p104
        %p316 = pneg %p128
        %p317 = pneg %p125
        %p318 = pneg %p149
        %p319 = pneg %p146
        %p320 = scmp.lt.s32.totalorder %s23, 1
        %s321 = scalar_select %p320, %s23, 1
        %s322 = smul.addr %s321, 8
        %s323 = scalar_lea.vmem %s6, %s322
        %p324 = pneg %p175
        %p325 = pneg %p172
        %p326 = pneg %p201
        %p327 = pneg %p198
        %s328 = sand.u32 %s188, 1
        %s329 = scalar_lea.sflag [#allocation4], %s328
        %s330 = sand.u32 %s188, 1
        %s331 = smul.addr %s330, 8
        %s332 = scalar_lea.vmem [#allocation8], %s331
        %p333 = scmp.lt.s32.totalorder %s23, 1
        %s334 = scalar_select %p333, %s23, 1
        %s335 = smul.addr %s334, 8
        %s336 = scalar_lea.vmem %s0, %s335
        %p337 = scmp.lt.s32.totalorder %s23, 1
        %s338 = scalar_select %p337, %s23, 1
        %s339 = smul.addr %s338, 8
        %s340 = scalar_lea.vmem %s6, %s339
        %v341 = vld [vmem:[%s336] sm:$0xff]
        %v342 = vld [vmem:[#allocation2] sm:$0xff]
        %v343 = vld [vmem:[#allocation2 + $0x8] sm:$0xff]
        %v344 = vld [vmem:[#allocation2 + $0x10] sm:$0xff]
        %v345 = vld [vmem:[#allocation2 + $0x18] sm:$0xff]
        %v346 = vld [vmem:[#allocation2 + $0x20] sm:$0xff]
        %v347 = vld [vmem:[#allocation2 + $0x28] sm:$0xff]
        %v348 = vld [vmem:[#allocation2 + $0x30] sm:$0xff]
        %v349 = vld [vmem:[#allocation2 + $0x38] sm:$0xff]
        %v350 = vld [vmem:[#allocation2 + $0x40] sm:$0xff]
        %v351 = vld [vmem:[#allocation2 + $0x48] sm:$0xff]
        %v352 = vld [vmem:[#allocation2 + $0x50] sm:$0xff]
        %v353 = vld [vmem:[#allocation2 + $0x58] sm:$0xff]
        %v354 = vld [vmem:[#allocation2 + $0x60] sm:$0xff]
        %v355 = vld [vmem:[#allocation2 + $0x68] sm:$0xff]
        %v356 = vld [vmem:[#allocation2 + $0x70] sm:$0xff]
        %v357 = vld [vmem:[#allocation2 + $0x78] sm:$0xff]
        %v358 = vld [vmem:[%s2] sm:$0x1]
        %v360 = vperm.slane %v358, 0
        %362 = vmatpush.msra.mxu0 %v357
        %363 = vmatpush.msra.mxu0 %v356
        %364 = vmatpush.msra.mxu0 %v355
        %365 = vmatpush.msra.mxu0 %v354
        %366 = vmatpush.msra.mxu0 %v353
        %367 = vmatpush.msra.mxu0 %v352
        %368 = vmatpush.msra.mxu0 %v351
        %369 = vmatpush.msra.mxu0 %v350
        %370 = vmatpush.msra.mxu0 %v349
        %371 = vmatpush.msra.mxu0 %v348
        %372 = vmatpush.msra.mxu0 %v347
        %373 = vmatpush.msra.mxu0 %v346
        %374 = vmatpush.msra.mxu0 %v345
        %375 = vmatpush.msra.mxu0 %v344
        %376 = vmatpush.msra.mxu0 %v343
        %377 = vmatpush.msra.mxu0 %v342
        %378 = vmatmul.f32.gmra.mxu0 %v341
        %v379 = vpop.f32.mrf.mxu0
        %v380 = vadd.f32 %v360, %v379
        %381 = vdwg.mxu0
        %v382 = vld [vmem:[#allocation5] sm:$0xff]
        %v383 = vld [vmem:[#allocation5 + $0x8] sm:$0xff]
        %v384 = vld [vmem:[#allocation5 + $0x10] sm:$0xff]
        %v385 = vld [vmem:[#allocation5 + $0x18] sm:$0xff]
        %v386 = vld [vmem:[#allocation5 + $0x20] sm:$0xff]
        %v387 = vld [vmem:[#allocation5 + $0x28] sm:$0xff]
        %v388 = vld [vmem:[#allocation5 + $0x30] sm:$0xff]
        %v389 = vld [vmem:[#allocation5 + $0x38] sm:$0xff]
        %v390 = vld [vmem:[#allocation5 + $0x40] sm:$0xff]
        %v391 = vld [vmem:[#allocation5 + $0x48] sm:$0xff]
        %v392 = vld [vmem:[#allocation5 + $0x50] sm:$0xff]
        %v393 = vld [vmem:[#allocation5 + $0x58] sm:$0xff]
        %v394 = vld [vmem:[#allocation5 + $0x60] sm:$0xff]
        %v395 = vld [vmem:[#allocation5 + $0x68] sm:$0xff]
        %v396 = vld [vmem:[#allocation5 + $0x70] sm:$0xff]
        %v397 = vld [vmem:[#allocation5 + $0x78] sm:$0xff]
        %v398 = vld [vmem:[%s5] sm:$0x1]
        %v400 = vperm.slane %v398, 0
        %402 = vmatpush.msra.mxu0 %v397
        %403 = vmatpush.msra.mxu0 %v396
        %404 = vmatpush.msra.mxu0 %v395
        %405 = vmatpush.msra.mxu0 %v394
        %406 = vmatpush.msra.mxu0 %v393
        %407 = vmatpush.msra.mxu0 %v392
        %408 = vmatpush.msra.mxu0 %v391
        %409 = vmatpush.msra.mxu0 %v390
        %410 = vmatpush.msra.mxu0 %v389
        %411 = vmatpush.msra.mxu0 %v388
        %412 = vmatpush.msra.mxu0 %v387
        %413 = vmatpush.msra.mxu0 %v386
        %414 = vmatpush.msra.mxu0 %v385
        %415 = vmatpush.msra.mxu0 %v384
        %416 = vmatpush.msra.mxu0 %v383
        %417 = vmatpush.msra.mxu0 %v382
        %418 = vmatmul.f32.gmra.mxu0 %v380
        %v419 = vpop.f32.mrf.mxu0
        %v420 = vadd.f32 %v400, %v419
        %421 = vdwg.mxu0
        %422 = vmax.xlane.f32.xlu0 %v420
        %v423 = vpop.xlane.xlu0 %422
        %v424 = vsub.f32 %v420, %v423
        %v425 = vmul.f32 %v424, 1.442695
        %v426 = vpow.pop %v425
        %427 = vadd.xlane.f32.xlu0 %v426
        %v428 = vpop.xlane.xlu0 %427
        %v429 = vld [vmem:[#allocation7] sm:$0xff]
        %v430 = vld [vmem:[#allocation7 + $0x8] sm:$0xff]
        %v431 = vld [vmem:[#allocation7 + $0x10] sm:$0xff]
        %v432 = vld [vmem:[#allocation7 + $0x18] sm:$0xff]
        %v433 = vld [vmem:[#allocation7 + $0x20] sm:$0xff]
        %v434 = vld [vmem:[#allocation7 + $0x28] sm:$0xff]
        %v435 = vld [vmem:[#allocation7 + $0x30] sm:$0xff]
        %v436 = vld [vmem:[#allocation7 + $0x38] sm:$0xff]
        %v437 = vld [vmem:[#allocation7 + $0x40] sm:$0xff]
        %v438 = vld [vmem:[#allocation7 + $0x48] sm:$0xff]
        %v439 = vld [vmem:[#allocation7 + $0x50] sm:$0xff]
        %v440 = vld [vmem:[#allocation7 + $0x58] sm:$0xff]
        %v441 = vld [vmem:[#allocation7 + $0x60] sm:$0xff]
        %v442 = vld [vmem:[#allocation7 + $0x68] sm:$0xff]
        %v443 = vld [vmem:[#allocation7 + $0x70] sm:$0xff]
        %v444 = vld [vmem:[#allocation7 + $0x78] sm:$0xff]
        %445 = vmatpush.msra.mxu0 %v444
        %446 = vmatpush.msra.mxu0 %v443
        %447 = vmatpush.msra.mxu0 %v442
        %448 = vmatpush.msra.mxu0 %v441
        %449 = vmatpush.msra.mxu0 %v440
        %450 = vmatpush.msra.mxu0 %v439
        %451 = vmatpush.msra.mxu0 %v438
        %452 = vmatpush.msra.mxu0 %v437
        %453 = vmatpush.msra.mxu0 %v436
        %454 = vmatpush.msra.mxu0 %v435
        %455 = vmatpush.msra.mxu0 %v434
        %456 = vmatpush.msra.mxu0 %v433
        %457 = vmatpush.msra.mxu0 %v432
        %458 = vmatpush.msra.mxu0 %v431
        %459 = vmatpush.msra.mxu0 %v430
        %460 = vmatpush.msra.mxu0 %v429
        %461 = vmatmul.f32.gmra.mxu0 %v426
        %v462 = vpop.f32.mrf.mxu0
        %v463 = vadd.f32 0.0, %v462
        %464 = vdwg.mxu0
        %v465 = vrcp.pop %v428
        %v466 = vmul.f32 %v428, %v465
        %v467 = vsub.f32 1.0, %v466
        %v468 = vmul.f32 %v465, %v467
        %v469 = vadd.f32 %v465, %v468
        %vm470 = vweird.f32 %v428
        %vm471 = vweird.f32 %v465
        %vm472 = vmor %vm470, %vm471
        %v473 = vsel %vm472, %v465, %v469
        %v474 = vand.u32 2147483647, %v428
        %vm475 = vcmp.eq.f32.partialorder %v474, 8.507059e+37
        %v476 = vand.u32 %v428, 2147483648
        %v477 = vor.u32 1.1754944e-38, %v476
        %v478 = vsel %vm475, %v477, %v473
        %v479 = vmul.f32 %v463, %v478
        %v480 = vld [vmem:[%s340] sm:$0xff]
        %v481 = vsub.f32 %v341, %v479
        %483 = vset.pattern.permute.xlu0 0
        %484 = vperm.xlu0 %483, %v480
        %v485 = vpop.permute.xlu0 %484
        %v487 = vmul.f32 %v485, %v481
        %v488 = vadd.f32 %v479, %v487
        %489 = vst [vmem:[%s332] sm:$0xff] %v488
        %s490 = sand.u32 %s188, 1
        %s491 = scalar_lea.sflag [#allocation4], %s490
        %s492 = sand.u32 %s188, 1
        %s493 = smul.addr %s492, 8
        %s494 = scalar_lea.vmem [#allocation8], %s493
        // Predicated region
        $region61: #{tpu_custom_call.1} parent=47 // pred_check
          %p495 = pneg %p198
        $region62: #{tpu_custom_call.1} parent=47 // pred_check_branch
          %497 = sbr.rel (%p495) target = $region64
        $region63: #{tpu_custom_call.1} parent=47 // pred_region
          %499 = vsyncadd %s491, 0
          %s500 = smul.addr %s23, 8
          %s501 = scalar_lea.hbm %s7, %s500
          %s503 = sshll.u32 %s494, 4
          %s504 = int_to_ptr.vmem [resolvable:$true] %s503
          %s505 = sshll.u32 %s501, 4
          %s506 = int_to_ptr.hbm [resolvable:$true] %s505
          %508 = dma.vmem_to_hbm [thread:$0]  %s504, 128, %s506, %s491
        $region64: #{tpu_custom_call.1} parent=47 // pred_fallthru
          _
      $region48: #{tpu_custom_call.1} parent=5 // pred_fallthru
        _
      %p509 = scmp.le.s32.totalorder 2, %s18
      // Predicated region
      $region65: #{tpu_custom_call.1} parent=5 // pred_check
        %p510 = pneg %p509
      $region66: #{tpu_custom_call.1} parent=5 // pred_check_branch
        %512 = sbr.rel (%p510) target = $region68
      $region67: #{tpu_custom_call.1} parent=5 // pred_region
        %s513 = ssub.s32 %s18, 2
        // Predicated region
        $region69: #{tpu_custom_call.1} parent=67 // pred_check
          %p514 = pneg %p204
        $region70: #{tpu_custom_call.1} parent=67 // pred_check_branch
          %516 = sbr.rel (%p514) target = $region72
        $region71: #{tpu_custom_call.1} parent=67 // pred_region
          %s517 = sand.u32 %s189, 1
          %s518 = scalar_lea.sflag [#allocation4], %s517
          %s519 = sand.u32 %s189, 1
          %s520 = smul.addr %s519, 8
          %s521 = scalar_lea.vmem [#allocation8], %s520
          %523 = dma.done %s518, 128
        $region72: #{tpu_custom_call.1} parent=67 // pred_fallthru
          _
      $region68: #{tpu_custom_call.1} parent=5 // pred_fallthru
        _
    $region6: #{tpu_custom_call.1} parent=1 // loop_footer
      %s22 = sadd.s32 1, %s18
    $region7: #{tpu_custom_call.1} parent=1 // loop_footer_branch
      %17 = sbr.rel target = $region3
    $region8: #{tpu_custom_call.1} parent=1 // loop_exit
      _
    %524 = vsyncpa [#allocation3], 1
    %s525 = scalar_lea.sflag [#allocation3], 1
    %526 = vsyncpa %s525, 1
    %527 = vsyncpa [#allocation6], 1
    %528 = vsyncpa [#allocation4], 1
    %s529 = scalar_lea.sflag [#allocation4], 1
    %530 = vsyncpa %s529, 1

// kernel: tpu_custom_call.1
$region0: #{tpu_custom_call.1}
  #allocation0 [shape = 'u32[]', space=smem, size = 0x4, offset = 0x4, fixed_abs, tag = 'smem constant byte address 0x4 - core index']
  #allocation1 [shape = 'u32[72,128]{1,0:T(1,128)}', space=vmem, size = 0x9000, scoped, tag = 'internal scratch']
  %s0 = inlined_call_operand.vmem [shape: f32[16,128], index: 0, kind: input, shape index: {}]
  %s1 = inlined_call_operand.hbm [shape: f32[128,128], index: 1, kind: input, shape index: {}]
  %s2 = inlined_call_operand.vmem [shape: f32[1,128], index: 2, kind: input, shape index: {}]
  %s3 = inlined_call_operand.hbm [shape: f32[128,128], index: 3, kind: input, shape index: {}]
  %s4 = inlined_call_operand.hbm [shape: f32[128,128], index: 4, kind: input, shape index: {}]
  %s5 = inlined_call_operand.vmem [shape: f32[1,128], index: 5, kind: input, shape index: {}]
  %s6 = inlined_call_operand.vmem [shape: f32[16,1], index: 6, kind: input, shape index: {}]
  %s7 = inlined_call_operand.hbm [shape: f32[16,128], index: 7, kind: output, shape index: {}]
  %s8 = sld [smem:[#allocation0]]
  $region73: #{tpu_custom_call.1} parent=0
    _
  %s10 = ssub.s32 1, %s8
  %s11 = scalar_select 0, %s10, %s8
  $region1: #{tpu_custom_call.1} parent=0
    #allocation2 [shape = 'u8[65536]{0}', space=vmem, size = 0x10000, scoped, tag = 'input window, operand 1, single buffered']
    #allocation3 [shape = 's32[2]{0}', space=sflag, size = 0x8, scoped, tag = 'scoped memory for tpu_custom_call.1']
    #allocation4 [shape = 's32[2]{0}', space=sflag, size = 0x8, scoped, tag = 'scoped memory for tpu_custom_call.1']
    #allocation5 [shape = 'u8[65536]{0}', space=vmem, size = 0x10000, scoped, tag = 'input window, operand 3, single buffered']
    #allocation6 [shape = 's32[1]{0}', space=sflag, size = 0x4, scoped, tag = 'scoped memory for tpu_custom_call.1']
    #allocation7 [shape = 'u8[65536]{0}', space=vmem, size = 0x10000, scoped, tag = 'input window, operand 4, single buffered']
    #allocation8 [shape = 'u8[8192]{0}', space=vmem, size = 0x2000, scoped, tag = 'output window, operand 0']
    %12 = vsyncpa [#allocation3], 0
    %13 = vsyncpa [#allocation6], 0
    %14 = vsyncpa [#allocation4], 0
    %s15 = scalar_lea.sflag [#allocation4], 1
    %16 = vsyncpa %s15, 0
    loop: start=0, step=1, limit=4
    $region2: #{tpu_custom_call.1} parent=1 // loop_pre_header
      _
    $region3: #{tpu_custom_call.1} parent=1 // loop_header
      %s18 = sphi 0, %s22
      %p19 = scmp.ge.s32.totalorder %s18, 4
      %s28 = sphi 0, %s30
      %s31 = sphi 0, %s28
      %s32 = sphi 0, %s31
      %s48 = sphi 0, %s32
      %s52 = sphi 0, %s52
      %s54 = sphi 0, %s52
      %s55 = sphi 0, %s54
      %s69 = sphi 0, %s55
      %s73 = sphi 0, %s73
      %s75 = sphi 0, %s73
      %s76 = sphi 0, %s75
      %s90 = sphi 0, %s76
      %s94 = sphi 0, %s94
      %s96 = sphi 0, %s94
      %s97 = sphi 0, %s96
      %s111 = sphi 0, %s97
      %s115 = sphi 0, %s115
      %s117 = sphi 0, %s115
      %s118 = sphi 0, %s117
      %s132 = sphi 0, %s118
      %s136 = sphi 0, %s136
      %s138 = sphi 0, %s136
      %s139 = sphi 0, %s138
      %s153 = sphi 0, %s139
      %s159 = sphi 0, %s161
      %s162 = sphi 0, %s159
      %s163 = sphi 0, %s162
      %s179 = sphi 0, %s163
      %s185 = sphi 0, %s187
      %s188 = sphi 0, %s185
      %s189 = sphi 0, %s188
      %s205 = sphi 0, %s189
    $region4: #{tpu_custom_call.1} parent=1 // loop_header_branch
      %21 = sbr.rel (%p19) target = $region8
    $region5: #{tpu_custom_call.1} parent=1 // loop_body
      %s23 = ssub.s32 %s18, 1
      %s24 = ssub.s32 %s18, 2
      %s25 = sadd.s32 %s18, 1
      %s26 = ssub.s32 %s18, %s25
      %p27 = scmp.eq.s32.totalorder %s26, 0
      %s29 = sadd.s32 %s28, 1
      %s30 = scalar_select %p27, %s28, %s29
      %p33 = pneg %p27
      %p34 = scmp.eq.s32.totalorder %s18, 1
      %p35 = por %p33, %p34
      %p36 = scmp.ne.s32.totalorder %s28, %s31
      %p37 = scmp.eq.s32.totalorder %s18, 0
      %p38 = por %p36, %p37
      %p39 = scmp.ne.s32.totalorder %s28, %s31
      %p40 = scmp.eq.s32.totalorder %s23, 1
      %p41 = por %p39, %p40
      %p42 = scmp.ne.s32.totalorder %s31, %s32
      %p43 = scmp.eq.s32.totalorder %s23, 0
      %p44 = por %p42, %p43
      %p45 = scmp.ne.s32.totalorder %s31, %s32
      %p46 = scmp.eq.s32.totalorder %s24, 1
      %p47 = por %p45, %p46
      %p49 = scmp.ne.s32.totalorder %s32, %s48
      %p50 = scmp.eq.s32.totalorder %s24, 0
      %p51 = por %p49, %p50
      %s53 = sadd.s32 %s52, 1
      %p56 = scmp.eq.s32.totalorder %s18, 1
      %p57 = scmp.ne.s32.totalorder %s52, %s54
      %p58 = scmp.eq.s32.totalorder %s18, 0
      %p59 = por %p57, %p58
      %p60 = scmp.ne.s32.totalorder %s52, %s54
      %p61 = scmp.eq.s32.totalorder %s23, 1
      %p62 = por %p60, %p61
      %p63 = scmp.ne.s32.totalorder %s54, %s55
      %p64 = scmp.eq.s32.totalorder %s23, 0
      %p65 = por %p63, %p64
      %p66 = scmp.ne.s32.totalorder %s54, %s55
      %p67 = scmp.eq.s32.totalorder %s24, 1
      %p68 = por %p66, %p67
      %p70 = scmp.ne.s32.totalorder %s55, %s69
      %p71 = scmp.eq.s32.totalorder %s24, 0
      %p72 = por %p70, %p71
      %s74 = sadd.s32 %s73, 1
      %p77 = scmp.eq.s32.totalorder %s18, 1
      %p78 = scmp.ne.s32.totalorder %s73, %s75
      %p79 = scmp.eq.s32.totalorder %s18, 0
      %p80 = por %p78, %p79
      %p81 = scmp.ne.s32.totalorder %s73, %s75
      %p82 = scmp.eq.s32.totalorder %s23, 1
      %p83 = por %p81, %p82
      %p84 = scmp.ne.s32.totalorder %s75, %s76
      %p85 = scmp.eq.s32.totalorder %s23, 0
      %p86 = por %p84, %p85
      %p87 = scmp.ne.s32.totalorder %s75, %s76
      %p88 = scmp.eq.s32.totalorder %s24, 1
      %p89 = por %p87, %p88
      %p91 = scmp.ne.s32.totalorder %s76, %s90
      %p92 = scmp.eq.s32.totalorder %s24, 0
      %p93 = por %p91, %p92
      %s95 = sadd.s32 %s94, 1
      %p98 = scmp.eq.s32.totalorder %s18, 1
      %p99 = scmp.ne.s32.totalorder %s94, %s96
      %p100 = scmp.eq.s32.totalorder %s18, 0
      %p101 = por %p99, %p100
      %p102 = scmp.ne.s32.totalorder %s94, %s96
      %p103 = scmp.eq.s32.totalorder %s23, 1
      %p104 = por %p102, %p103
      %p105 = scmp.ne.s32.totalorder %s96, %s97
      %p106 = scmp.eq.s32.totalorder %s23, 0
      %p107 = por %p105, %p106
      %p108 = scmp.ne.s32.totalorder %s96, %s97
      %p109 = scmp.eq.s32.totalorder %s24, 1
      %p110 = por %p108, %p109
      %p112 = scmp.ne.s32.totalorder %s97, %s111
      %p113 = scmp.eq.s32.totalorder %s24, 0
      %p114 = por %p112, %p113
      %s116 = sadd.s32 %s115, 1
      %p119 = scmp.eq.s32.totalorder %s18, 1
      %p120 = scmp.ne.s32.totalorder %s115, %s117
      %p121 = scmp.eq.s32.totalorder %s18, 0
      %p122 = por %p120, %p121
      %p123 = scmp.ne.s32.totalorder %s115, %s117
      %p124 = scmp.eq.s32.totalorder %s23, 1
      %p125 = por %p123, %p124
      %p126 = scmp.ne.s32.totalorder %s117, %s118
      %p127 = scmp.eq.s32.totalorder %s23, 0
      %p128 = por %p126, %p127
      %p129 = scmp.ne.s32.totalorder %s117, %s118
      %p130 = scmp.eq.s32.totalorder %s24, 1
      %p131 = por %p129, %p130
      %p133 = scmp.ne.s32.totalorder %s118, %s132
      %p134 = scmp.eq.s32.totalorder %s24, 0
      %p135 = por %p133, %p134
      %s137 = sadd.s32 %s136, 1
      %p140 = scmp.eq.s32.totalorder %s18, 1
      %p141 = scmp.ne.s32.totalorder %s136, %s138
      %p142 = scmp.eq.s32.totalorder %s18, 0
      %p143 = por %p141, %p142
      %p144 = scmp.ne.s32.totalorder %s136, %s138
      %p145 = scmp.eq.s32.totalorder %s23, 1
      %p146 = por %p144, %p145
      %p147 = scmp.ne.s32.totalorder %s138, %s139
      %p148 = scmp.eq.s32.totalorder %s23, 0
      %p149 = por %p147, %p148
      %p150 = scmp.ne.s32.totalorder %s138, %s139
      %p151 = scmp.eq.s32.totalorder %s24, 1
      %p152 = por %p150, %p151
      %p154 = scmp.ne.s32.totalorder %s139, %s153
      %p155 = scmp.eq.s32.totalorder %s24, 0
      %p156 = por %p154, %p155
      %s157 = ssub.s32 %s18, %s25
      %p158 = scmp.eq.s32.totalorder %s157, 0
      %s160 = sadd.s32 %s159, 1
      %s161 = scalar_select %p158, %s159, %s160
      %p164 = pneg %p158
      %p165 = scmp.eq.s32.totalorder %s18, 1
      %p166 = por %p164, %p165
      %p167 = scmp.ne.s32.totalorder %s159, %s162
      %p168 = scmp.eq.s32.totalorder %s18, 0
      %p169 = por %p167, %p168
      %p170 = scmp.ne.s32.totalorder %s159, %s162
      %p171 = scmp.eq.s32.totalorder %s23, 1
      %p172 = por %p170, %p171
      %p173 = scmp.ne.s32.totalorder %s162, %s163
      %p174 = scmp.eq.s32.totalorder %s23, 0
      %p175 = por %p173, %p174
      %p176 = scmp.ne.s32.totalorder %s162, %s163
      %p177 = scmp.eq.s32.totalorder %s24, 1
      %p178 = por %p176, %p177
      %p180 = scmp.ne.s32.totalorder %s163, %s179
      %p181 = scmp.eq.s32.totalorder %s24, 0
      %p182 = por %p180, %p181
      %s183 = ssub.s32 %s18, %s25
      %p184 = scmp.eq.s32.totalorder %s183, 0
      %s186 = sadd.s32 %s185, 1
      %s187 = scalar_select %p184, %s185, %s186
      %p190 = pneg %p184
      %p191 = scmp.eq.s32.totalorder %s18, 1
      %p192 = por %p190, %p191
      %p193 = scmp.ne.s32.totalorder %s185, %s188
      %p194 = scmp.eq.s32.totalorder %s18, 0
      %p195 = por %p193, %p194
      %p196 = scmp.ne.s32.totalorder %s185, %s188
      %p197 = scmp.eq.s32.totalorder %s23, 1
      %p198 = por %p196, %p197
      %p199 = scmp.ne.s32.totalorder %s188, %s189
      %p200 = scmp.eq.s32.totalorder %s23, 0
      %p201 = por %p199, %p200
      %p202 = scmp.ne.s32.totalorder %s188, %s189
      %p203 = scmp.eq.s32.totalorder %s24, 1
      %p204 = por %p202, %p203
      %p206 = scmp.ne.s32.totalorder %s189, %s205
      %p207 = scmp.eq.s32.totalorder %s24, 0
      %p208 = por %p206, %p207
      %p209 = scmp.le.s32.totalorder 1, %s18
      %p210 = scmp.lt.s32.totalorder %s18, 3
      %p211 = pnand %p209, %p210
      %p212 = pneg %p211
      // Predicated region
      $region9: #{tpu_custom_call.1} parent=5 // pred_check
        _
      $region10: #{tpu_custom_call.1} parent=5 // pred_check_branch
        %214 = sbr.rel (%p211) target = $region12
      $region11: #{tpu_custom_call.1} parent=5 // pred_region
        %s215 = ssub.s32 %s18, 1
        // Predicated region
        $region13: #{tpu_custom_call.1} parent=11 // pred_check
          %p216 = pneg %p65
        $region14: #{tpu_custom_call.1} parent=11 // pred_check_branch
          %218 = sbr.rel (%p216) target = $region16
        $region15: #{tpu_custom_call.1} parent=11 // pred_region
          %220 = vsyncadd [#allocation3], 0
          %s221 = sshll.u32 %s1, 4
          %s222 = int_to_ptr.hbm [resolvable:$true] %s221
          %s223 = sshll.u32 [#allocation2], 4
          %s224 = int_to_ptr.vmem [resolvable:$true] %s223
          %229 = dma.hbm_to_vmem [thread:$0]  %s222, 2048, %s224, [#allocation3], 128, 128, 8
        $region16: #{tpu_custom_call.1} parent=11 // pred_fallthru
          _
        // Predicated region
        $region17: #{tpu_custom_call.1} parent=11 // pred_check
          %p230 = pneg %p86
        $region18: #{tpu_custom_call.1} parent=11 // pred_check_branch
          %232 = sbr.rel (%p230) target = $region20
        $region19: #{tpu_custom_call.1} parent=11 // pred_region
          _
        $region20: #{tpu_custom_call.1} parent=11 // pred_fallthru
          _
        // Predicated region
        $region21: #{tpu_custom_call.1} parent=11 // pred_check
          %p233 = pneg %p107
        $region22: #{tpu_custom_call.1} parent=11 // pred_check_branch
          %235 = sbr.rel (%p233) target = $region24
        $region23: #{tpu_custom_call.1} parent=11 // pred_region
          %237 = vsyncadd [#allocation6], 0
          %s238 = sshll.u32 %s3, 4
          %s239 = int_to_ptr.hbm [resolvable:$true] %s238
          %s240 = sshll.u32 [#allocation5], 4
          %s241 = int_to_ptr.vmem [resolvable:$true] %s240
          %246 = dma.hbm_to_vmem [thread:$0]  %s239, 2048, %s241, [#allocation6], 128, 128, 8
        $region24: #{tpu_custom_call.1} parent=11 // pred_fallthru
          _
        // Predicated region
        $region25: #{tpu_custom_call.1} parent=11 // pred_check
          %p247 = pneg %p128
        $region26: #{tpu_custom_call.1} parent=11 // pred_check_branch
          %249 = sbr.rel (%p247) target = $region28
        $region27: #{tpu_custom_call.1} parent=11 // pred_region
          %251 = vsyncadd [#allocation6], 0
          %s252 = sshll.u32 %s4, 4
          %s253 = int_to_ptr.hbm [resolvable:$true] %s252
          %s254 = sshll.u32 [#allocation7], 4
          %s255 = int_to_ptr.vmem [resolvable:$true] %s254
          %260 = dma.hbm_to_vmem [thread:$0]  %s253, 2048, %s255, [#allocation6], 128, 128, 8
        $region28: #{tpu_custom_call.1} parent=11 // pred_fallthru
          _
        // Predicated region
        $region29: #{tpu_custom_call.1} parent=11 // pred_check
          %p261 = pneg %p149
        $region30: #{tpu_custom_call.1} parent=11 // pred_check_branch
          %263 = sbr.rel (%p261) target = $region32
        $region31: #{tpu_custom_call.1} parent=11 // pred_region
          _
        $region32: #{tpu_custom_call.1} parent=11 // pred_fallthru
          _
      $region12: #{tpu_custom_call.1} parent=5 // pred_fallthru
        _
      %p264 = scmp.lt.s32.totalorder %s18, 2
      // Predicated region
      $region33: #{tpu_custom_call.1} parent=5 // pred_check
        %p265 = pneg %p264
      $region34: #{tpu_custom_call.1} parent=5 // pred_check_branch
        %267 = sbr.rel (%p265) target = $region36
      $region35: #{tpu_custom_call.1} parent=5 // pred_region
        // Predicated region
        $region37: #{tpu_custom_call.1} parent=35 // pred_check
          %p268 = pneg %p38
        $region38: #{tpu_custom_call.1} parent=35 // pred_check_branch
          %270 = sbr.rel (%p268) target = $region40
        $region39: #{tpu_custom_call.1} parent=35 // pred_region
          %p271 = scmp.lt.s32.totalorder %s18, 1
          %s272 = scalar_select %p271, %s18, 1
          %s273 = smul.addr %s272, 8
          %s274 = scalar_lea.vmem %s0, %s273
        $region40: #{tpu_custom_call.1} parent=35 // pred_fallthru
          _
        // Predicated region
        $region41: #{tpu_custom_call.1} parent=35 // pred_check
          %p275 = pneg %p169
        $region42: #{tpu_custom_call.1} parent=35 // pred_check_branch
          %277 = sbr.rel (%p275) target = $region44
        $region43: #{tpu_custom_call.1} parent=35 // pred_region
          %p278 = scmp.lt.s32.totalorder %s18, 1
          %s279 = scalar_select %p278, %s18, 1
          %s280 = smul.addr %s279, 8
          %s281 = scalar_lea.vmem %s6, %s280
        $region44: #{tpu_custom_call.1} parent=35 // pred_fallthru
          _
      $region36: #{tpu_custom_call.1} parent=5 // pred_fallthru
        _
      %p282 = scmp.le.s32.totalorder 1, %s18
      %p283 = scmp.lt.s32.totalorder %s18, 3
      %p284 = pnand %p282, %p283
      %p285 = pneg %p284
      // Predicated region
      $region45: #{tpu_custom_call.1} parent=5 // pred_check
        _
      $region46: #{tpu_custom_call.1} parent=5 // pred_check_branch
        %287 = sbr.rel (%p284) target = $region48
      $region47: #{tpu_custom_call.1} parent=5 // pred_region
        %s288 = ssub.s32 %s18, 1
        // Predicated region
        $region49: #{tpu_custom_call.1} parent=47 // pred_check
          %p289 = pneg %p65
        $region50: #{tpu_custom_call.1} parent=47 // pred_check_branch
          %291 = sbr.rel (%p289) target = $region52
        $region51: #{tpu_custom_call.1} parent=47 // pred_region
          %293 = dma.done [#allocation3], 2048
        $region52: #{tpu_custom_call.1} parent=47 // pred_fallthru
          _
        // Predicated region
        $region53: #{tpu_custom_call.1} parent=47 // pred_check
          %p294 = pneg %p107
        $region54: #{tpu_custom_call.1} parent=47 // pred_check_branch
          %296 = sbr.rel (%p294) target = $region56
        $region55: #{tpu_custom_call.1} parent=47 // pred_region
          %298 = dma.done [#allocation6], 2048
        $region56: #{tpu_custom_call.1} parent=47 // pred_fallthru
          _
        // Predicated region
        $region57: #{tpu_custom_call.1} parent=47 // pred_check
          %p299 = pneg %p128
        $region58: #{tpu_custom_call.1} parent=47 // pred_check_branch
          %301 = sbr.rel (%p299) target = $region60
        $region59: #{tpu_custom_call.1} parent=47 // pred_region
          %303 = dma.done [#allocation6], 2048
        $region60: #{tpu_custom_call.1} parent=47 // pred_fallthru
          _
        %p304 = scmp.lt.s32.totalorder %s23, 1
        %s305 = scalar_select %p304, %s23, 1
        %s306 = smul.addr %s305, 8
        %s307 = scalar_lea.vmem %s0, %s306
        %p308 = pneg %p44
        %p309 = pneg %p41
        %p310 = pneg %p65
        %p311 = pneg %p62
        %p312 = pneg %p86
        %p313 = pneg %p83
        %p314 = pneg %p107
        %p315 = pneg %p104
        %p316 = pneg %p128
        %p317 = pneg %p125
        %p318 = pneg %p149
        %p319 = pneg %p146
        %p320 = scmp.lt.s32.totalorder %s23, 1
        %s321 = scalar_select %p320, %s23, 1
        %s322 = smul.addr %s321, 8
        %s323 = scalar_lea.vmem %s6, %s322
        %p324 = pneg %p175
        %p325 = pneg %p172
        %p326 = pneg %p201
        %p327 = pneg %p198
        %s328 = sand.u32 %s188, 1
        %s329 = scalar_lea.sflag [#allocation4], %s328
        %s330 = sand.u32 %s188, 1
        %s331 = smul.addr %s330, 8
        %s332 = scalar_lea.vmem [#allocation8], %s331
        %p333 = scmp.lt.s32.totalorder %s23, 1
        %s334 = scalar_select %p333, %s23, 1
        %s335 = smul.addr %s334, 8
        %s336 = scalar_lea.vmem %s0, %s335
        %p337 = scmp.lt.s32.totalorder %s23, 1
        %s338 = scalar_select %p337, %s23, 1
        %s339 = smul.addr %s338, 8
        %s340 = scalar_lea.vmem %s6, %s339
        %v341 = vld [vmem:[%s336] sm:$0xff]
        %v342 = vld [vmem:[#allocation2] sm:$0xff]
        %v343 = vld [vmem:[#allocation2 + $0x8] sm:$0xff]
        %v344 = vld [vmem:[#allocation2 + $0x10] sm:$0xff]
        %v345 = vld [vmem:[#allocation2 + $0x18] sm:$0xff]
        %v346 = vld [vmem:[#allocation2 + $0x20] sm:$0xff]
        %v347 = vld [vmem:[#allocation2 + $0x28] sm:$0xff]
        %v348 = vld [vmem:[#allocation2 + $0x30] sm:$0xff]
        %v349 = vld [vmem:[#allocation2 + $0x38] sm:$0xff]
        %v350 = vld [vmem:[#allocation2 + $0x40] sm:$0xff]
        %v351 = vld [vmem:[#allocation2 + $0x48] sm:$0xff]
        %v352 = vld [vmem:[#allocation2 + $0x50] sm:$0xff]
        %v353 = vld [vmem:[#allocation2 + $0x58] sm:$0xff]
        %v354 = vld [vmem:[#allocation2 + $0x60] sm:$0xff]
        %v355 = vld [vmem:[#allocation2 + $0x68] sm:$0xff]
        %v356 = vld [vmem:[#allocation2 + $0x70] sm:$0xff]
        %v357 = vld [vmem:[#allocation2 + $0x78] sm:$0xff]
        %v358 = vld [vmem:[%s2] sm:$0x1]
        %v360 = vperm.slane %v358, 0
        %362 = vmatpush.msra.mxu0 %v357
        %363 = vmatpush.msra.mxu0 %v356
        %364 = vmatpush.msra.mxu0 %v355
        %365 = vmatpush.msra.mxu0 %v354
        %366 = vmatpush.msra.mxu0 %v353
        %367 = vmatpush.msra.mxu0 %v352
        %368 = vmatpush.msra.mxu0 %v351
        %369 = vmatpush.msra.mxu0 %v350
        %370 = vmatpush.msra.mxu0 %v349
        %371 = vmatpush.msra.mxu0 %v348
        %372 = vmatpush.msra.mxu0 %v347
        %373 = vmatpush.msra.mxu0 %v346
        %374 = vmatpush.msra.mxu0 %v345
        %375 = vmatpush.msra.mxu0 %v344
        %376 = vmatpush.msra.mxu0 %v343
        %377 = vmatpush.msra.mxu0 %v342
        %378 = vmatmul.f32.gmra.mxu0 %v341
        %v379 = vpop.f32.mrf.mxu0
        %v380 = vadd.f32 %v360, %v379
        %381 = vdwg.mxu0
        %v382 = vld [vmem:[#allocation5] sm:$0xff]
        %v383 = vld [vmem:[#allocation5 + $0x8] sm:$0xff]
        %v384 = vld [vmem:[#allocation5 + $0x10] sm:$0xff]
        %v385 = vld [vmem:[#allocation5 + $0x18] sm:$0xff]
        %v386 = vld [vmem:[#allocation5 + $0x20] sm:$0xff]
        %v387 = vld [vmem:[#allocation5 + $0x28] sm:$0xff]
        %v388 = vld [vmem:[#allocation5 + $0x30] sm:$0xff]
        %v389 = vld [vmem:[#allocation5 + $0x38] sm:$0xff]
        %v390 = vld [vmem:[#allocation5 + $0x40] sm:$0xff]
        %v391 = vld [vmem:[#allocation5 + $0x48] sm:$0xff]
        %v392 = vld [vmem:[#allocation5 + $0x50] sm:$0xff]
        %v393 = vld [vmem:[#allocation5 + $0x58] sm:$0xff]
        %v394 = vld [vmem:[#allocation5 + $0x60] sm:$0xff]
        %v395 = vld [vmem:[#allocation5 + $0x68] sm:$0xff]
        %v396 = vld [vmem:[#allocation5 + $0x70] sm:$0xff]
        %v397 = vld [vmem:[#allocation5 + $0x78] sm:$0xff]
        %v398 = vld [vmem:[%s5] sm:$0x1]
        %v400 = vperm.slane %v398, 0
        %402 = vmatpush.msra.mxu0 %v397
        %403 = vmatpush.msra.mxu0 %v396
        %404 = vmatpush.msra.mxu0 %v395
        %405 = vmatpush.msra.mxu0 %v394
        %406 = vmatpush.msra.mxu0 %v393
        %407 = vmatpush.msra.mxu0 %v392
        %408 = vmatpush.msra.mxu0 %v391
        %409 = vmatpush.msra.mxu0 %v390
        %410 = vmatpush.msra.mxu0 %v389
        %411 = vmatpush.msra.mxu0 %v388
        %412 = vmatpush.msra.mxu0 %v387
        %413 = vmatpush.msra.mxu0 %v386
        %414 = vmatpush.msra.mxu0 %v385
        %415 = vmatpush.msra.mxu0 %v384
        %416 = vmatpush.msra.mxu0 %v383
        %417 = vmatpush.msra.mxu0 %v382
        %418 = vmatmul.f32.gmra.mxu0 %v380
        %v419 = vpop.f32.mrf.mxu0
        %v420 = vadd.f32 %v400, %v419
        %421 = vdwg.mxu0
        %422 = vmax.xlane.f32.xlu0 %v420
        %v423 = vpop.xlane.xlu0 %422
        %v424 = vsub.f32 %v420, %v423
        %v425 = vmul.f32 %v424, 1.442695
        %v426 = vpow.pop %v425
        %427 = vadd.xlane.f32.xlu0 %v426
        %v428 = vpop.xlane.xlu0 %427
        %v429 = vld [vmem:[#allocation7] sm:$0xff]
        %v430 = vld [vmem:[#allocation7 + $0x8] sm:$0xff]
        %v431 = vld [vmem:[#allocation7 + $0x10] sm:$0xff]
        %v432 = vld [vmem:[#allocation7 + $0x18] sm:$0xff]
        %v433 = vld [vmem:[#allocation7 + $0x20] sm:$0xff]
        %v434 = vld [vmem:[#allocation7 + $0x28] sm:$0xff]
        %v435 = vld [vmem:[#allocation7 + $0x30] sm:$0xff]
        %v436 = vld [vmem:[#allocation7 + $0x38] sm:$0xff]
        %v437 = vld [vmem:[#allocation7 + $0x40] sm:$0xff]
        %v438 = vld [vmem:[#allocation7 + $0x48] sm:$0xff]
        %v439 = vld [vmem:[#allocation7 + $0x50] sm:$0xff]
        %v440 = vld [vmem:[#allocation7 + $0x58] sm:$0xff]
        %v441 = vld [vmem:[#allocation7 + $0x60] sm:$0xff]
        %v442 = vld [vmem:[#allocation7 + $0x68] sm:$0xff]
        %v443 = vld [vmem:[#allocation7 + $0x70] sm:$0xff]
        %v444 = vld [vmem:[#allocation7 + $0x78] sm:$0xff]
        %445 = vmatpush.msra.mxu0 %v444
        %446 = vmatpush.msra.mxu0 %v443
        %447 = vmatpush.msra.mxu0 %v442
        %448 = vmatpush.msra.mxu0 %v441
        %449 = vmatpush.msra.mxu0 %v440
        %450 = vmatpush.msra.mxu0 %v439
        %451 = vmatpush.msra.mxu0 %v438
        %452 = vmatpush.msra.mxu0 %v437
        %453 = vmatpush.msra.mxu0 %v436
        %454 = vmatpush.msra.mxu0 %v435
        %455 = vmatpush.msra.mxu0 %v434
        %456 = vmatpush.msra.mxu0 %v433
        %457 = vmatpush.msra.mxu0 %v432
        %458 = vmatpush.msra.mxu0 %v431
        %459 = vmatpush.msra.mxu0 %v430
        %460 = vmatpush.msra.mxu0 %v429
        %461 = vmatmul.f32.gmra.mxu0 %v426
        %v462 = vpop.f32.mrf.mxu0
        %v463 = vadd.f32 0.0, %v462
        %464 = vdwg.mxu0
        %v465 = vrcp.pop %v428
        %v466 = vmul.f32 %v428, %v465
        %v467 = vsub.f32 1.0, %v466
        %v468 = vmul.f32 %v465, %v467
        %v469 = vadd.f32 %v465, %v468
        %vm470 = vweird.f32 %v428
        %vm471 = vweird.f32 %v465
        %vm472 = vmor %vm470, %vm471
        %v473 = vsel %vm472, %v465, %v469
        %v474 = vand.u32 2147483647, %v428
        %vm475 = vcmp.eq.f32.partialorder %v474, 8.507059e+37
        %v476 = vand.u32 %v428, 2147483648
        %v477 = vor.u32 1.1754944e-38, %v476
        %v478 = vsel %vm475, %v477, %v473
        %v479 = vmul.f32 %v463, %v478
        %v480 = vld [vmem:[%s340] sm:$0xff]
        %v481 = vsub.f32 %v341, %v479
        %483 = vset.pattern.permute.xlu0 0
        %484 = vperm.xlu0 %483, %v480
        %v485 = vpop.permute.xlu0 %484
        %v487 = vmul.f32 %v485, %v481
        %v488 = vadd.f32 %v479, %v487
        %489 = vst [vmem:[%s332] sm:$0xff] %v488
        %s490 = sand.u32 %s188, 1
        %s491 = scalar_lea.sflag [#allocation4], %s490
        %s492 = sand.u32 %s188, 1
        %s493 = smul.addr %s492, 8
        %s494 = scalar_lea.vmem [#allocation8], %s493
        // Predicated region
        $region61: #{tpu_custom_call.1} parent=47 // pred_check
          %p495 = pneg %p198
        $region62: #{tpu_custom_call.1} parent=47 // pred_check_branch
          %497 = sbr.rel (%p495) target = $region64
        $region63: #{tpu_custom_call.1} parent=47 // pred_region
          %499 = vsyncadd %s491, 0
          %s500 = smul.addr %s23, 8
          %s501 = scalar_lea.hbm %s7, %s500
          %s503 = sshll.u32 %s494, 4
          %s504 = int_to_ptr.vmem [resolvable:$true] %s503
          %s505 = sshll.u32 %s501, 4
          %s506 = int_to_ptr.hbm [resolvable:$true] %s505
          %508 = dma.vmem_to_hbm [thread:$0]  %s504, 128, %s506, %s491
        $region64: #{tpu_custom_call.1} parent=47 // pred_fallthru
          _
      $region48: #{tpu_custom_call.1} parent=5 // pred_fallthru
        _
      %p509 = scmp.le.s32.totalorder 2, %s18
      // Predicated region
      $region65: #{tpu_custom_call.1} parent=5 // pred_check
        %p510 = pneg %p509
      $region66: #{tpu_custom_call.1} parent=5 // pred_check_branch
        %512 = sbr.rel (%p510) target = $region68
      $region67: #{tpu_custom_call.1} parent=5 // pred_region
        %s513 = ssub.s32 %s18, 2
        // Predicated region
        $region69: #{tpu_custom_call.1} parent=67 // pred_check
          %p514 = pneg %p204
        $region70: #{tpu_custom_call.1} parent=67 // pred_check_branch
          %516 = sbr.rel (%p514) target = $region72
        $region71: #{tpu_custom_call.1} parent=67 // pred_region
          %s517 = sand.u32 %s189, 1
          %s518 = scalar_lea.sflag [#allocation4], %s517
          %s519 = sand.u32 %s189, 1
          %s520 = smul.addr %s519, 8
          %s521 = scalar_lea.vmem [#allocation8], %s520
          %523 = dma.done %s518, 128
        $region72: #{tpu_custom_call.1} parent=67 // pred_fallthru
          _
      $region68: #{tpu_custom_call.1} parent=5 // pred_fallthru
        _
    $region6: #{tpu_custom_call.1} parent=1 // loop_footer
      %s22 = sadd.s32 1, %s18
    $region7: #{tpu_custom_call.1} parent=1 // loop_footer_branch
      %17 = sbr.rel target = $region3
    $region8: #{tpu_custom_call.1} parent=1 // loop_exit
      _
    %524 = vsyncpa [#allocation3], 1
    %s525 = scalar_lea.sflag [#allocation3], 1
    %526 = vsyncpa %s525, 1
    %527 = vsyncpa [#allocation6], 1
    %528 = vsyncpa [#allocation4], 1
    %s529 = scalar_lea.sflag [#allocation4], 1
    %530 = vsyncpa %s529, 1

</llo_original>
